<compile_context>
chip_gen: v5e
topology: v5e:2x2
jax: 0.10.0
libtpu: 0.0.40
codegen_flags: <defaults>
</compile_context>

<pallas_src>
import numpy as np

import jax
import jax.numpy as jnp
from jax.experimental import pallas as pl
from jax.experimental.pallas import tpu as pltpu


_LANE = 128
_SMALL_INPUT_BYTES = 256 * 1024  # below this, fused XLA multiply beats kernel launch cost


def _drop_path_kernel(x_ref, mask_ref, o_ref):
    # mask_ref is (tb, 1) in x's dtype: 0 for dropped rows, 1/keep_prob (or 1
    # if scale_by_keep=False) for kept ones.  Broadcast-multiply across the
    # lane-tiled feature slab in the native dtype.
    o_ref[...] = x_ref[...] * mask_ref[...]


def _sublane_pack(dtype):
    """Sublane packing factor: 8 for 32-bit, 16 for bf16, 32 for 8-bit."""
    itemsize = jnp.dtype(dtype).itemsize
    return 8 * max(1, 4 // itemsize)


def _choose_tiles(B2, N2, dtype, target_bytes=2 << 20):
    """Pick (batch_tile, feature_tile) jointly so each x block is ~target_bytes.

    tn is a lane-dense (multiple-of-128) feature tile; tb then grows (in
    multiples of the dtype packing factor) until the block fills the budget.
    Ragged tail blocks (cdiv grids) are fine: block shapes stay (8,128)-aligned.
    """
    itemsize = jnp.dtype(dtype).itemsize
    pack = _sublane_pack(dtype)
    # Feature tile: big but small enough that a pack-row slab fits the budget.
    tn_cap = max(_LANE, (target_bytes // (pack * itemsize)) // _LANE * _LANE)
    tn = min(N2, tn_cap)
    # Batch tile: fill the remaining byte budget, pack-aligned.
    budget_rows = max(pack, target_bytes // max(1, tn * itemsize))
    tb = min(B2, max(pack, (budget_rows // pack) * pack))
    # v7x has 2 TensorCores: keep >= 2 grid steps along a parallel axis for
    # non-tiny inputs (neutral on v5e/v6e which have 1 TC).
    n_steps = (-(-B2 // tb)) * (-(-N2 // tn))
    if n_steps < 2 and B2 >= 2 * pack:
        half = max(pack, -(-(B2 // 2) // pack) * pack)
        tb = min(tb, half)
    return tb, tn


def drop_path(x, key, drop_prob: float = 0.0, training: bool = False,
              scale_by_keep: bool = True, use_pallas=None):
    """JAX/Pallas equivalent of timm's drop_path (per-sample stochastic depth).

    use_pallas: None = auto (size-based), True = prefer the Pallas kernel,
    False = always use the fused XLA multiply.
    """
    if drop_prob == 0.0 or not training:
        return x
    keep_prob = 1.0 - drop_prob
    B = x.shape[0]
    N = int(np.prod(x.shape[1:]))

    # Per-sample Bernoulli(keep_prob), drawn once outside the kernel.
    keep = jax.random.bernoulli(key, p=keep_prob, shape=(B,))
    scale = (1.0 / keep_prob) if (scale_by_keep and keep_prob > 0.0) else 1.0
    mask = jnp.where(keep, jnp.float32(scale), jnp.float32(0.0)).astype(x.dtype)
    # TODO(synk): for fp8 activations keep the mask in bf16/f32 and cast after the multiply.

    itemsize = jnp.dtype(x.dtype).itemsize
    total_bytes = B * N * itemsize
    pack = _sublane_pack(x.dtype)

    # Find a sublane-dense layout for the Pallas path: fold part of the
    # feature dim into the batch (sublane) axis when B isn't pack-aligned.
    fold_k = 0
    if N % _LANE == 0:
        if B % pack == 0:
            fold_k = 1
        else:
            for k in range(2, 2 * pack + 1):
                if N % k == 0 and (N // k) % _LANE == 0 and (B * k) % pack == 0:
                    fold_k = k
                    break

    want_pallas = use_pallas if use_pallas is not None else (total_bytes >= _SMALL_INPUT_BYTES)
    if not want_pallas or fold_k == 0:
        # Tiny tensors, or shapes with no 128-aligned layout: a fused XLA
        # broadcast-multiply is faster / the correct fallback.
        bshape = (B,) + (1,) * (x.ndim - 1)
        return x * mask.reshape(bshape)

    B2, N2 = B * fold_k, N // fold_k
    x2 = x.reshape(B2, N2)
    if fold_k > 1:
        mask2 = jnp.repeat(mask.reshape(B, 1), fold_k, axis=0)
    else:
        mask2 = mask.reshape(B, 1)

    tb, tn = _choose_tiles(B2, N2, x.dtype)
    grid = (pl.cdiv(B2, tb), pl.cdiv(N2, tn))

    out = pl.pallas_call(
        _drop_path_kernel,
        out_shape=jax.ShapeDtypeStruct((B2, N2), x.dtype),
        grid=grid,
        in_specs=[
            pl.BlockSpec((tb, tn), lambda i, j: (i, j)),   # x tile
            pl.BlockSpec((tb, 1), lambda i, j: (i, 0)),    # per-row mask (reused across j)
        ],
        out_specs=pl.BlockSpec((tb, tn), lambda i, j: (i, j)),
        input_output_aliases={0: 0},
        compiler_params=pltpu.CompilerParams(
            dimension_semantics=("parallel", "parallel"),
            vmem_limit_bytes=32 * 1024 * 1024),
    )(x2, mask2)
    return out.reshape(x.shape)


class DropPath:
    """Mirror of the PyTorch DropPath module (forward only)."""

    def __init__(self, drop_prob: float = 0.0, scale_by_keep: bool = True):
        self.drop_prob = drop_prob
        self.scale_by_keep = scale_by_keep
        self.training = True

    def __call__(self, x, rng=0, use_pallas=None):
        # NOTE: passing the same rng on every call reuses the same drop pattern;
        # callers should thread fresh keys per step.
        if isinstance(rng, int):
            rng = jax.random.PRNGKey(rng)
        return drop_path(x, rng, self.drop_prob, self.training,
                         self.scale_by_keep, use_pallas=use_pallas)


def _check_drop_or_keep(x, y, keep_prob, rtol=1e-5, atol=1e-6):
    xn, yn = np.asarray(x, dtype=np.float32), np.asarray(y, dtype=np.float32)
    for b in range(xn.shape[0]):
        dropped = np.allclose(yn[b], 0.0, atol=atol)
        kept = np.allclose(yn[b], xn[b] / keep_prob, rtol=rtol, atol=atol)
        assert dropped or kept, f"sample {b} is neither dropped nor kept/scaled"


if __name__ == "__main__":
    key = jax.random.PRNGKey(0)
    k_x, k_drop, k_x2, k_drop2, k_x3, k_drop3 = jax.random.split(key, 6)

    drop_prob = 0.25
    keep_prob = 1.0 - drop_prob
    module = DropPath(drop_prob=drop_prob, scale_by_keep=True)
    module.training = True

    # 1) Spec-sized tiny input (2,4,16,16) f32 — force the Pallas kernel
    #    (exercises the B<8 sublane-folding path: (2,1024) -> (8,256)).
    B, C, H, W = 2, 4, 16, 16
    x = jax.random.normal(k_x, (B, C, H, W), dtype=jnp.float32)
    y = jax.block_until_ready(module(x, k_drop, use_pallas=True))
    _check_drop_or_keep(x, y, keep_prob)

    # 2) Larger f32 input (512 KiB) — auto path takes the kernel with a
    #    2-step batch grid (v7x megacore split).
    x_l = jax.random.normal(k_x2, (16, 8, 32, 32), dtype=jnp.float32)
    y_l = jax.block_until_ready(module(x_l, k_drop2))
    _check_drop_or_keep(x_l, y_l, keep_prob)

    # 3) bf16 input — exercises the packing-aligned (pack=16) fold path.
    x_b = jax.random.normal(k_x3, (4, 8, 32, 8), dtype=jnp.bfloat16)
    y_b = jax.block_until_ready(module(x_b, k_drop3, use_pallas=True))
    _check_drop_or_keep(x_b, y_b, keep_prob, rtol=2e-2, atol=1e-2)

    # 4) Eval mode (training=False) must be the identity, as in PyTorch.
    module.training = False
    y_eval = jax.block_until_ready(module(x, k_drop))
    assert np.allclose(np.asarray(y_eval), np.asarray(x))

    print("KERNEL_OK")
</pallas_src>

<mosaic_0001>
module attributes {stable_mosaic.version = 11 : i64} {
  func.func @_drop_path_kernel(%arg0: i32, %arg1: i32, %arg2: memref<8x256xf32, #tpu.memory_space<vmem>>, %arg3: memref<8x1xf32, #tpu.memory_space<vmem>>, %arg4: memref<8x256xf32, #tpu.memory_space<vmem>>) attributes {dimension_semantics = [#tpu.dimension_semantics<parallel>, #tpu.dimension_semantics<parallel>], iteration_bounds = array<i64: 1, 1>, scalar_prefetch = 0 : i64, scratch_operands = 0 : i64, tpu.core_type = #tpu.core_type<tc>, window_params = [{transform_indices = @transform_0, window_bounds = array<i64: 8, 256>}, {transform_indices = @transform_1, window_bounds = array<i64: 8, 1>}, {transform_indices = @transform_2, window_bounds = array<i64: 8, 256>}]} {
    %c0 = arith.constant 0 : index
    %c0_0 = arith.constant 0 : index
    %0 = vector.load %arg2[%c0, %c0_0] : memref<8x256xf32, #tpu.memory_space<vmem>>, vector<8x256xf32>
    %c0_1 = arith.constant 0 : index
    %c0_2 = arith.constant 0 : index
    %1 = vector.load %arg3[%c0_1, %c0_2] : memref<8x1xf32, #tpu.memory_space<vmem>>, vector<8x1xf32>
    %2 = vector.broadcast %1 : vector<8x1xf32> to vector<8x256xf32>
    %3 = arith.mulf %0, %2 : vector<8x256xf32>
    %c0_3 = arith.constant 0 : index
    %c0_4 = arith.constant 0 : index
    %4 = vector.load %arg4[%c0_3, %c0_4] : memref<8x256xf32, #tpu.memory_space<vmem>>, vector<8x256xf32>
    tpu.vector_store %arg4[%c0_3, %c0_4], %3 {strides = array<i32>} : memref<8x256xf32, #tpu.memory_space<vmem>>, vector<8x256xf32>,
    return
  }
  func.func @transform_0(%arg0: i32, %arg1: i32) -> (i32, i32) {
    %c0_i32 = arith.constant 0 : i32
    return %arg0, %arg1 : i32, i32
  }
  func.func @transform_1(%arg0: i32, %arg1: i32) -> (i32, i32) {
    %c0_i32 = arith.constant 0 : i32
    %c0_i32_0 = arith.constant 0 : i32
    return %arg0, %c0_i32 : i32, i32
  }
  func.func @transform_2(%arg0: i32, %arg1: i32) -> (i32, i32) {
    %c0_i32 = arith.constant 0 : i32
    return %arg0, %arg1 : i32, i32
  }
}

</mosaic_0001>

<llo_original>
// kernel: tpu_custom_call.1
$region0: #{tpu_custom_call.1}
  #allocation0 [shape = 'u32[]', space=smem, size = 0x4, offset = 0x4, fixed_abs, tag = 'smem constant byte address 0x4 - core index']
  #allocation1 [shape = 'u32[72,128]{1,0:T(1,128)}', space=vmem, size = 0x9000, scoped, tag = 'internal scratch']
  %s0 = inlined_call_operand.hbm [shape: f32[8,256], index: 0, kind: input, shape index: {}, may-alias: {0,2}]
  %s1 = inlined_call_operand.vmem [shape: f32[8,1], index: 1, kind: input, shape index: {}]
  %s2 = inlined_call_operand.hbm [shape: f32[8,256], index: 2, kind: output, shape index: {}, may-alias: {0,2}]
  %s3 = sld [smem:[#allocation0]]
  $region22: #{tpu_custom_call.1} parent=0
    _
  %s5 = ssub.s32 1, %s3
  %s6 = scalar_select 0, %s5, %s3
  $region1: #{tpu_custom_call.1} parent=0
    #allocation2 [shape = 'u8[8192]{0}', space=vmem, size = 0x2000, scoped, tag = 'input window, operand 0, single buffered']
    #allocation3 [shape = 's32[1]{0}', space=sflag, size = 0x4, scoped, tag = 'scoped memory for tpu_custom_call.1']
    #allocation4 [shape = 's32[1]{0}', space=sflag, size = 0x4, scoped, tag = 'scoped memory for tpu_custom_call.1']
    #allocation5 [shape = 'u8[8192]{0}', space=vmem, size = 0x2000, scoped, tag = 'output window, operand 0, single buffered']
    %7 = vsyncpa [#allocation3], 0
    %8 = vsyncpa [#allocation4], 0
    // Predicated region
    $region2: #{tpu_custom_call.1} parent=1 // pred_check
      _
    $region3: #{tpu_custom_call.1} parent=1 // pred_check_branch
      %10 = sbr.rel (0) target = $region5
    $region4: #{tpu_custom_call.1} parent=1 // pred_region
      %12 = vsyncadd [#allocation3], 0
      %s14 = sshll.u32 %s0, 4
      %s15 = int_to_ptr.hbm [resolvable:$true] %s14
      %s16 = sshll.u32 [#allocation2], 4
      %s17 = int_to_ptr.vmem [resolvable:$true] %s16
      %19 = dma.hbm_to_vmem [thread:$0]  %s15, 256, %s17, [#allocation3]
    $region5: #{tpu_custom_call.1} parent=1 // pred_fallthru
      _
    // Predicated region
    $region6: #{tpu_custom_call.1} parent=1 // pred_check
      _
    $region7: #{tpu_custom_call.1} parent=1 // pred_check_branch
      %21 = sbr.rel (0) target = $region9
    $region8: #{tpu_custom_call.1} parent=1 // pred_region
      _
    $region9: #{tpu_custom_call.1} parent=1 // pred_fallthru
      _
    // Predicated region
    $region10: #{tpu_custom_call.1} parent=1 // pred_check
      _
    $region11: #{tpu_custom_call.1} parent=1 // pred_check_branch
      %23 = sbr.rel (0) target = $region13
    $region12: #{tpu_custom_call.1} parent=1 // pred_region
      %25 = dma.done [#allocation3], 256
    $region13: #{tpu_custom_call.1} parent=1 // pred_fallthru
      _
    %v26 = vld [vmem:[#allocation2] sm:$0xff]
    %v27 = vld [vmem:[#allocation2 + $0x8] sm:$0xff]
    %v28 = vld [vmem:[%s1] sm:$0xff]
    %30 = vset.pattern.permute.xlu0 0
    %31 = vperm.xlu0 %30, %v28
    %v32 = vpop.permute.xlu0 %31
    %v34 = vmul.f32 %v26, %v32
    %v35 = vmul.f32 %v27, %v32
    %36 = vst [vmem:[#allocation5] sm:$0xff] %v34
    %37 = vst [vmem:[#allocation5 + $0x8] sm:$0xff] %v35
    // Predicated region
    $region14: #{tpu_custom_call.1} parent=1 // pred_check
      _
    $region15: #{tpu_custom_call.1} parent=1 // pred_check_branch
      %39 = sbr.rel (0) target = $region17
    $region16: #{tpu_custom_call.1} parent=1 // pred_region
      %41 = vsyncadd [#allocation4], 0
      %s43 = sshll.u32 [#allocation5], 4
      %s44 = int_to_ptr.vmem [resolvable:$true] %s43
      %s45 = sshll.u32 %s2, 4
      %s46 = int_to_ptr.hbm [resolvable:$true] %s45
      %48 = dma.vmem_to_hbm [thread:$0]  %s44, 256, %s46, [#allocation4]
    $region17: #{tpu_custom_call.1} parent=1 // pred_fallthru
      _
    // Predicated region
    $region18: #{tpu_custom_call.1} parent=1 // pred_check
      _
    $region19: #{tpu_custom_call.1} parent=1 // pred_check_branch
      %50 = sbr.rel (0) target = $region21
    $region20: #{tpu_custom_call.1} parent=1 // pred_region
      %52 = dma.done [#allocation4], 256
    $region21: #{tpu_custom_call.1} parent=1 // pred_fallthru
      _
    %53 = vsyncpa [#allocation3], 1
    %54 = vsyncpa [#allocation4], 1

</llo_original>
